<compile_context>
chip_gen: v5e
topology: v5e:2x2
jax: 0.10.0
libtpu: 0.0.40
codegen_flags: <defaults>
</compile_context>

<pallas_src>
import jax
import jax.numpy as jnp
from jax.experimental import pallas as pl
from jax.experimental.pallas import tpu as pltpu

LANE = 128   # TPU lane width; all feature/output dims padded to this
H1 = 64      # logical hidden sizes of the PyTorch module
H2 = 32


def _round_up(n, m):
    return (n + m - 1) // m * m


def mlp_kernel(x_ref, w1_ref, b1_ref, w2_ref, b2_ref, w3_ref, b3_ref, o_ref):
    # Layer 1: Linear(input_dim, 64) + ReLU   (hidden padded to 128 lanes)
    x = x_ref[...].astype(jnp.bfloat16)                       # bf16 MXU operand
    h1 = jnp.dot(x, w1_ref[...], preferred_element_type=jnp.float32) + b1_ref[...]
    h1 = jnp.maximum(h1, 0.0)                                 # f32 VALU (v5e-safe)
    # Dropout(0.3): identity at inference time.
    # Layer 2: Linear(64, 32) + ReLU
    h2 = jnp.dot(h1.astype(jnp.bfloat16), w2_ref[...],
                 preferred_element_type=jnp.float32) + b2_ref[...]
    h2 = jnp.maximum(h2, 0.0)
    # Layer 3: Linear(32, num_classes)  (output padded to 128 lanes -> dense vst)
    o_ref[...] = jnp.dot(h2.astype(jnp.bfloat16), w3_ref[...],
                         preferred_element_type=jnp.float32) + b3_ref[...]


def keypoint_mlp_forward(x, padded_params, *, num_classes, tile_b=512):
    """x: (B, input_dim) float32. padded_params: see pad_params()."""
    B, d_in = x.shape
    tile_b = min(tile_b, _round_up(B, 8))      # sublane-aligned batch tile
    b_pad = _round_up(B, tile_b)
    if b_pad != B:
        x = jnp.pad(x, ((0, b_pad - B), (0, 0)))
    grid = (b_pad // tile_b,)

    w1, b1 = padded_params["w1"], padded_params["b1"]
    w2, b2 = padded_params["w2"], padded_params["b2"]
    w3, b3 = padded_params["w3"], padded_params["b3"]

    def row_spec(shape):      # tiled along batch
        return pl.BlockSpec(shape, lambda i: (i, 0))

    def full_spec(shape):     # resident across the whole grid
        return pl.BlockSpec(shape, lambda i: (0, 0))

    flops = 2 * b_pad * (d_in * LANE + LANE * LANE + LANE * LANE)
    bytes_accessed = (
        x.size * x.dtype.itemsize                      # input reads
        + b_pad * LANE * 4                             # output writes (f32)
        + sum(a.size * a.dtype.itemsize for a in (w1, b1, w2, b2, w3, b3))
    )

    out = pl.pallas_call(
        mlp_kernel,
        out_shape=jax.ShapeDtypeStruct((b_pad, LANE), jnp.float32),
        grid=grid,
        in_specs=[
            row_spec((tile_b, d_in)),
            full_spec(w1.shape), full_spec(b1.shape),
            full_spec(w2.shape), full_spec(b2.shape),
            full_spec(w3.shape), full_spec(b3.shape),
        ],
        out_specs=row_spec((tile_b, LANE)),
        compiler_params=pltpu.CompilerParams(
            dimension_semantics=("parallel",)),
        cost_estimate=pl.CostEstimate(
            flops=flops, transcendentals=0, bytes_accessed=bytes_accessed),
    )(x, w1, b1, w2, b2, w3, b3)

    return out[:B, :num_classes]


def init_params(key, input_dim, num_classes):
    """PyTorch-default Linear init. Weights stored (in, out), biases (1, out)."""
    k1, k2, k3, k4, k5, k6 = jax.random.split(key, 6)

    def lin(kw, kb, fan_in, fan_out):
        bound = 1.0 / jnp.sqrt(jnp.float32(fan_in))
        w = jax.random.uniform(kw, (fan_in, fan_out), jnp.float32, -bound, bound)
        b = jax.random.uniform(kb, (1, fan_out), jnp.float32, -bound, bound)
        return w, b

    w1, b1 = lin(k1, k2, input_dim, H1)
    w2, b2 = lin(k3, k4, H1, H2)
    w3, b3 = lin(k5, k6, H2, num_classes)
    return {"w1": w1, "b1": b1, "w2": w2, "b2": b2, "w3": w3, "b3": b3}


def pad_params(p):
    """Zero-pad lane dims (and hidden contraction dims) to 128; weights -> bf16.

    Zero padding is semantics-preserving: padded hidden units have zero weight
    and zero bias -> ReLU(0) = 0 -> contribute nothing downstream; padded output
    columns (incl. b3 padding = 0) are sliced off in the wrapper.
    """
    def pad_to(a, shape):
        return jnp.pad(a, [(0, t - s) for s, t in zip(a.shape, shape)])

    d_in = p["w1"].shape[0]
    return {
        "w1": pad_to(p["w1"], (d_in, LANE)).astype(jnp.bfloat16),
        "b1": pad_to(p["b1"], (1, LANE)),
        "w2": pad_to(p["w2"], (LANE, LANE)).astype(jnp.bfloat16),
        "b2": pad_to(p["b2"], (1, LANE)),
        "w3": pad_to(p["w3"], (LANE, LANE)).astype(jnp.bfloat16),
        "b3": pad_to(p["b3"], (1, LANE)),
    }


def reference_forward_f32(x, p):
    h1 = jnp.maximum(x @ p["w1"] + p["b1"], 0.0)
    h2 = jnp.maximum(h1 @ p["w2"] + p["b2"], 0.0)
    return h2 @ p["w3"] + p["b3"]


def reference_forward_bf16(x, pp, num_classes):
    """Pure-JAX mirror of the kernel numerics (bf16 operands, f32 accumulate)."""
    bf = jnp.bfloat16
    h1 = jnp.maximum(
        jnp.dot(x.astype(bf), pp["w1"], preferred_element_type=jnp.float32) + pp["b1"], 0.0)
    h2 = jnp.maximum(
        jnp.dot(h1.astype(bf), pp["w2"], preferred_element_type=jnp.float32) + pp["b2"], 0.0)
    out = jnp.dot(h2.astype(bf), pp["w3"], preferred_element_type=jnp.float32) + pp["b3"]
    return out[:, :num_classes]


if __name__ == "__main__":
    input_dim = 42      # 21 keypoints x 2
    num_classes = 5
    batch = 8

    key = jax.random.PRNGKey(0)
    kx, kp = jax.random.split(key)
    x = jax.random.normal(kx, (batch, input_dim), jnp.float32)
    params = init_params(kp, input_dim, num_classes)
    pparams = pad_params(params)

    out = keypoint_mlp_forward(x, pparams, num_classes=num_classes)
    out = jax.block_until_ready(out)
    assert out.shape == (batch, num_classes)

    # Exact-numerics reference (same bf16/f32-acc recipe) and loose f32 reference.
    ref_bf16 = reference_forward_bf16(x, pparams, num_classes)
    ref_f32 = reference_forward_f32(x, params)
    assert jnp.allclose(out, ref_bf16, atol=1e-3, rtol=1e-3)
    assert jnp.allclose(out, ref_f32, atol=5e-2, rtol=5e-2)

    # Multi-tile / ragged-batch path: exercises grid > 1 and batch padding.
    x_big = jax.random.normal(jax.random.fold_in(kx, 1), (1050, input_dim), jnp.float32)
    out_big = jax.block_until_ready(
        keypoint_mlp_forward(x_big, pparams, num_classes=num_classes))
    assert out_big.shape == (1050, num_classes)
    assert jnp.allclose(out_big, reference_forward_bf16(x_big, pparams, num_classes),
                        atol=1e-3, rtol=1e-3)

    print("KERNEL_OK")
</pallas_src>

<mosaic_0001>
module attributes {stable_mosaic.version = 11 : i64} {
  func.func @mlp_kernel(%arg0: i32, %arg1: memref<8x42xf32, #tpu.memory_space<vmem>>, %arg2: memref<42x128xbf16, #tpu.memory_space<vmem>>, %arg3: memref<1x128xf32, #tpu.memory_space<vmem>>, %arg4: memref<128x128xbf16, #tpu.memory_space<vmem>>, %arg5: memref<1x128xf32, #tpu.memory_space<vmem>>, %arg6: memref<128x128xbf16, #tpu.memory_space<vmem>>, %arg7: memref<1x128xf32, #tpu.memory_space<vmem>>, %arg8: memref<8x128xf32, #tpu.memory_space<vmem>>) attributes {dimension_semantics = [#tpu.dimension_semantics<parallel>], iteration_bounds = array<i64: 1>, scalar_prefetch = 0 : i64, scratch_operands = 0 : i64, tpu.core_type = #tpu.core_type<tc>, window_params = [{transform_indices = @transform_0, window_bounds = array<i64: 8, 42>}, {pipeline_mode = #tpu.pipeline_mode<synchronous>, transform_indices = @transform_1, window_bounds = array<i64: 42, 128>}, {pipeline_mode = #tpu.pipeline_mode<synchronous>, transform_indices = @transform_2, window_bounds = array<i64: 1, 128>}, {pipeline_mode = #tpu.pipeline_mode<synchronous>, transform_indices = @transform_3, window_bounds = array<i64: 128, 128>}, {pipeline_mode = #tpu.pipeline_mode<synchronous>, transform_indices = @transform_4, window_bounds = array<i64: 1, 128>}, {pipeline_mode = #tpu.pipeline_mode<synchronous>, transform_indices = @transform_5, window_bounds = array<i64: 128, 128>}, {pipeline_mode = #tpu.pipeline_mode<synchronous>, transform_indices = @transform_6, window_bounds = array<i64: 1, 128>}, {transform_indices = @transform_7, window_bounds = array<i64: 8, 128>}]} {
    %c0 = arith.constant 0 : index
    %c0_0 = arith.constant 0 : index
    %0 = vector.load %arg1[%c0, %c0_0] : memref<8x42xf32, #tpu.memory_space<vmem>>, vector<8x42xf32>
    %1 = arith.truncf %0 : vector<8x42xf32> to vector<8x42xbf16>
    %c0_1 = arith.constant 0 : index
    %c0_2 = arith.constant 0 : index
    %2 = vector.load %arg2[%c0_1, %c0_2] : memref<42x128xbf16, #tpu.memory_space<vmem>>, vector<42x128xbf16>
    %cst = arith.constant dense<0.000000e+00> : vector<8x128xf32>
    %3 = tpu.matmul %1, %2, %cst {dimension_numbers = #tpu.dot_dimension_numbers<[1], [0], [0], [1], [0, 0, 1, 1], [], []>} : vector<8x42xbf16>, vector<42x128xbf16>, vector<8x128xf32> -> vector<8x128xf32>
    %c0_3 = arith.constant 0 : index
    %c0_4 = arith.constant 0 : index
    %4 = vector.load %arg3[%c0_3, %c0_4] : memref<1x128xf32, #tpu.memory_space<vmem>>, vector<1x128xf32>
    %5 = vector.broadcast %4 : vector<1x128xf32> to vector<8x128xf32>
    %6 = arith.addf %3, %5 : vector<8x128xf32>
    %cst_5 = arith.constant 0.000000e+00 : f32
    %7 = vector.broadcast %cst_5 : f32 to vector<8x128xf32>
    %8 = arith.maximumf %6, %7 : vector<8x128xf32>
    %9 = arith.truncf %8 : vector<8x128xf32> to vector<8x128xbf16>
    %c0_6 = arith.constant 0 : index
    %c0_7 = arith.constant 0 : index
    %10 = vector.load %arg4[%c0_6, %c0_7] : memref<128x128xbf16, #tpu.memory_space<vmem>>, vector<128x128xbf16>
    %cst_8 = arith.constant dense<0.000000e+00> : vector<8x128xf32>
    %11 = tpu.matmul %9, %10, %cst_8 {dimension_numbers = #tpu.dot_dimension_numbers<[1], [0], [0], [1], [0, 0, 1, 1], [], []>} : vector<8x128xbf16>, vector<128x128xbf16>, vector<8x128xf32> -> vector<8x128xf32>
    %c0_9 = arith.constant 0 : index
    %c0_10 = arith.constant 0 : index
    %12 = vector.load %arg5[%c0_9, %c0_10] : memref<1x128xf32, #tpu.memory_space<vmem>>, vector<1x128xf32>
    %13 = vector.broadcast %12 : vector<1x128xf32> to vector<8x128xf32>
    %14 = arith.addf %11, %13 : vector<8x128xf32>
    %cst_11 = arith.constant 0.000000e+00 : f32
    %15 = vector.broadcast %cst_11 : f32 to vector<8x128xf32>
    %16 = arith.maximumf %14, %15 : vector<8x128xf32>
    %17 = arith.truncf %16 : vector<8x128xf32> to vector<8x128xbf16>
    %c0_12 = arith.constant 0 : index
    %c0_13 = arith.constant 0 : index
    %18 = vector.load %arg6[%c0_12, %c0_13] : memref<128x128xbf16, #tpu.memory_space<vmem>>, vector<128x128xbf16>
    %cst_14 = arith.constant dense<0.000000e+00> : vector<8x128xf32>
    %19 = tpu.matmul %17, %18, %cst_14 {dimension_numbers = #tpu.dot_dimension_numbers<[1], [0], [0], [1], [0, 0, 1, 1], [], []>} : vector<8x128xbf16>, vector<128x128xbf16>, vector<8x128xf32> -> vector<8x128xf32>
    %c0_15 = arith.constant 0 : index
    %c0_16 = arith.constant 0 : index
    %20 = vector.load %arg7[%c0_15, %c0_16] : memref<1x128xf32, #tpu.memory_space<vmem>>, vector<1x128xf32>
    %21 = vector.broadcast %20 : vector<1x128xf32> to vector<8x128xf32>
    %22 = arith.addf %19, %21 : vector<8x128xf32>
    %c0_17 = arith.constant 0 : index
    %c0_18 = arith.constant 0 : index
    %23 = vector.load %arg8[%c0_17, %c0_18] : memref<8x128xf32, #tpu.memory_space<vmem>>, vector<8x128xf32>
    tpu.vector_store %arg8[%c0_17, %c0_18], %22 {strides = array<i32>} : memref<8x128xf32, #tpu.memory_space<vmem>>, vector<8x128xf32>,
    return
  }
  func.func @transform_0(%arg0: i32) -> (i32, i32) {
    %c0_i32 = arith.constant 0 : i32
    %c0_i32_0 = arith.constant 0 : i32
    return %arg0, %c0_i32 : i32, i32
  }
  func.func @transform_1(%arg0: i32) -> (i32, i32) {
    %c0_i32 = arith.constant 0 : i32
    %c0_i32_0 = arith.constant 0 : i32
    %c0_i32_1 = arith.constant 0 : i32
    return %c0_i32, %c0_i32_0 : i32, i32
  }
  func.func @transform_2(%arg0: i32) -> (i32, i32) {
    %c0_i32 = arith.constant 0 : i32
    %c0_i32_0 = arith.constant 0 : i32
    %c0_i32_1 = arith.constant 0 : i32
    return %c0_i32, %c0_i32_0 : i32, i32
  }
  func.func @transform_3(%arg0: i32) -> (i32, i32) {
    %c0_i32 = arith.constant 0 : i32
    %c0_i32_0 = arith.constant 0 : i32
    %c0_i32_1 = arith.constant 0 : i32
    return %c0_i32, %c0_i32_0 : i32, i32
  }
  func.func @transform_4(%arg0: i32) -> (i32, i32) {
    %c0_i32 = arith.constant 0 : i32
    %c0_i32_0 = arith.constant 0 : i32
    %c0_i32_1 = arith.constant 0 : i32
    return %c0_i32, %c0_i32_0 : i32, i32
  }
  func.func @transform_5(%arg0: i32) -> (i32, i32) {
    %c0_i32 = arith.constant 0 : i32
    %c0_i32_0 = arith.constant 0 : i32
    %c0_i32_1 = arith.constant 0 : i32
    return %c0_i32, %c0_i32_0 : i32, i32
  }
  func.func @transform_6(%arg0: i32) -> (i32, i32) {
    %c0_i32 = arith.constant 0 : i32
    %c0_i32_0 = arith.constant 0 : i32
    %c0_i32_1 = arith.constant 0 : i32
    return %c0_i32, %c0_i32_0 : i32, i32
  }
  func.func @transform_7(%arg0: i32) -> (i32, i32) {
    %c0_i32 = arith.constant 0 : i32
    %c0_i32_0 = arith.constant 0 : i32
    return %arg0, %c0_i32 : i32, i32
  }
}

</mosaic_0001>

<llo_original>
// kernel: tpu_custom_call.1
$region0: #{tpu_custom_call.1}
  #allocation0 [shape = 'u32[]', space=smem, size = 0x4, offset = 0x4, fixed_abs, tag = 'smem constant byte address 0x4 - core index']
  #allocation1 [shape = 'u32[72,128]{1,0:T(1,128)}', space=vmem, size = 0x9000, scoped, tag = 'internal scratch']
  %s0 = inlined_call_operand.hbm [shape: f32[8,42], index: 0, kind: input, shape index: {}]
  %s1 = inlined_call_operand.hbm [shape: bf16[42,128], index: 1, kind: input, shape index: {}]
  %s2 = inlined_call_operand.vmem [shape: f32[1,128], index: 2, kind: input, shape index: {}]
  %s3 = inlined_call_operand.hbm [shape: bf16[128,128], index: 3, kind: input, shape index: {}]
  %s4 = inlined_call_operand.vmem [shape: f32[1,128], index: 4, kind: input, shape index: {}]
  %s5 = inlined_call_operand.hbm [shape: bf16[128,128], index: 5, kind: input, shape index: {}]
  %s6 = inlined_call_operand.vmem [shape: f32[1,128], index: 6, kind: input, shape index: {}]
  %s7 = inlined_call_operand.hbm [shape: f32[8,128], index: 7, kind: output, shape index: {}]
  %s8 = sld [smem:[#allocation0]]
  $region54: #{tpu_custom_call.1} parent=0
    _
  %s10 = ssub.s32 1, %s8
  %s11 = scalar_select 0, %s10, %s8
  $region1: #{tpu_custom_call.1} parent=0
    #allocation2 [shape = 'u8[4096]{0}', space=vmem, size = 0x1000, scoped, tag = 'input window, operand 0, single buffered']
    #allocation3 [shape = 's32[1]{0}', space=sflag, size = 0x4, scoped, tag = 'scoped memory for tpu_custom_call.1']
    #allocation4 [shape = 's32[1]{0}', space=sflag, size = 0x4, scoped, tag = 'scoped memory for tpu_custom_call.1']
    #allocation5 [shape = 'u8[12288]{0}', space=vmem, size = 0x3000, scoped, tag = 'input window, operand 1, single buffered']
    #allocation6 [shape = 's32[1]{0}', space=sflag, size = 0x4, scoped, tag = 'scoped memory for tpu_custom_call.1']
    #allocation7 [shape = 'u8[32768]{0}', space=vmem, size = 0x8000, scoped, tag = 'input window, operand 3, single buffered']
    #allocation8 [shape = 'u8[32768]{0}', space=vmem, size = 0x8000, scoped, tag = 'input window, operand 5, single buffered']
    #allocation9 [shape = 's32[1]{0}', space=sflag, size = 0x4, scoped, tag = 'scoped memory for tpu_custom_call.1']
    #allocation10 [shape = 'u8[4096]{0}', space=vmem, size = 0x1000, scoped, tag = 'output window, operand 0, single buffered']
    %12 = vsyncpa [#allocation3], 0
    %13 = vsyncpa [#allocation6], 0
    %14 = vsyncpa [#allocation9], 0
    %15 = vsyncpa [#allocation4], 0
    // Predicated region
    $region2: #{tpu_custom_call.1} parent=1 // pred_check
      _
    $region3: #{tpu_custom_call.1} parent=1 // pred_check_branch
      %17 = sbr.rel (0) target = $region5
    $region4: #{tpu_custom_call.1} parent=1 // pred_region
      %19 = vsyncadd [#allocation3], 0
      %s21 = sshll.u32 %s0, 4
      %s22 = int_to_ptr.hbm [resolvable:$true] %s21
      %s23 = sshll.u32 [#allocation2], 4
      %s24 = int_to_ptr.vmem [resolvable:$true] %s23
      %26 = dma.hbm_to_vmem [thread:$0]  %s22, 128, %s24, [#allocation3]
    $region5: #{tpu_custom_call.1} parent=1 // pred_fallthru
      _
    // Predicated region
    $region6: #{tpu_custom_call.1} parent=1 // pred_check
      _
    $region7: #{tpu_custom_call.1} parent=1 // pred_check_branch
      %28 = sbr.rel (0) target = $region9
    $region8: #{tpu_custom_call.1} parent=1 // pred_region
      %30 = vsyncadd [#allocation6], 0
      %s31 = sshll.u32 %s1, 4
      %s32 = int_to_ptr.hbm [resolvable:$true] %s31
      %s33 = sshll.u32 [#allocation5], 4
      %s34 = int_to_ptr.vmem [resolvable:$true] %s33
      %39 = dma.hbm_to_vmem [thread:$0]  %s32, 384, %s34, [#allocation6], 64, 64, 4
    $region9: #{tpu_custom_call.1} parent=1 // pred_fallthru
      _
    // Predicated region
    $region10: #{tpu_custom_call.1} parent=1 // pred_check
      _
    $region11: #{tpu_custom_call.1} parent=1 // pred_check_branch
      %41 = sbr.rel (0) target = $region13
    $region12: #{tpu_custom_call.1} parent=1 // pred_region
      _
    $region13: #{tpu_custom_call.1} parent=1 // pred_fallthru
      _
    // Predicated region
    $region14: #{tpu_custom_call.1} parent=1 // pred_check
      _
    $region15: #{tpu_custom_call.1} parent=1 // pred_check_branch
      %43 = sbr.rel (0) target = $region17
    $region16: #{tpu_custom_call.1} parent=1 // pred_region
      %45 = vsyncadd [#allocation6], 0
      %s46 = sshll.u32 %s3, 4
      %s47 = int_to_ptr.hbm [resolvable:$true] %s46
      %s48 = sshll.u32 [#allocation7], 4
      %s49 = int_to_ptr.vmem [resolvable:$true] %s48
      %54 = dma.hbm_to_vmem [thread:$0]  %s47, 1024, %s49, [#allocation6], 64, 64, 4
    $region17: #{tpu_custom_call.1} parent=1 // pred_fallthru
      _
    // Predicated region
    $region18: #{tpu_custom_call.1} parent=1 // pred_check
      _
    $region19: #{tpu_custom_call.1} parent=1 // pred_check_branch
      %56 = sbr.rel (0) target = $region21
    $region20: #{tpu_custom_call.1} parent=1 // pred_region
      _
    $region21: #{tpu_custom_call.1} parent=1 // pred_fallthru
      _
    // Predicated region
    $region22: #{tpu_custom_call.1} parent=1 // pred_check
      _
    $region23: #{tpu_custom_call.1} parent=1 // pred_check_branch
      %58 = sbr.rel (0) target = $region25
    $region24: #{tpu_custom_call.1} parent=1 // pred_region
      %60 = vsyncadd [#allocation9], 0
      %s61 = sshll.u32 %s5, 4
      %s62 = int_to_ptr.hbm [resolvable:$true] %s61
      %s63 = sshll.u32 [#allocation8], 4
      %s64 = int_to_ptr.vmem [resolvable:$true] %s63
      %69 = dma.hbm_to_vmem [thread:$0]  %s62, 1024, %s64, [#allocation9], 64, 64, 4
    $region25: #{tpu_custom_call.1} parent=1 // pred_fallthru
      _
    // Predicated region
    $region26: #{tpu_custom_call.1} parent=1 // pred_check
      _
    $region27: #{tpu_custom_call.1} parent=1 // pred_check_branch
      %71 = sbr.rel (0) target = $region29
    $region28: #{tpu_custom_call.1} parent=1 // pred_region
      _
    $region29: #{tpu_custom_call.1} parent=1 // pred_fallthru
      _
    // Predicated region
    $region30: #{tpu_custom_call.1} parent=1 // pred_check
      _
    $region31: #{tpu_custom_call.1} parent=1 // pred_check_branch
      %73 = sbr.rel (0) target = $region33
    $region32: #{tpu_custom_call.1} parent=1 // pred_region
      %75 = dma.done [#allocation3], 128
    $region33: #{tpu_custom_call.1} parent=1 // pred_fallthru
      _
    // Predicated region
    $region34: #{tpu_custom_call.1} parent=1 // pred_check
      _
    $region35: #{tpu_custom_call.1} parent=1 // pred_check_branch
      %77 = sbr.rel (0) target = $region37
    $region36: #{tpu_custom_call.1} parent=1 // pred_region
      %79 = dma.done [#allocation6], 384
    $region37: #{tpu_custom_call.1} parent=1 // pred_fallthru
      _
    // Predicated region
    $region38: #{tpu_custom_call.1} parent=1 // pred_check
      _
    $region39: #{tpu_custom_call.1} parent=1 // pred_check_branch
      %81 = sbr.rel (0) target = $region41
    $region40: #{tpu_custom_call.1} parent=1 // pred_region
      %83 = dma.done [#allocation6], 1024
    $region41: #{tpu_custom_call.1} parent=1 // pred_fallthru
      _
    // Predicated region
    $region42: #{tpu_custom_call.1} parent=1 // pred_check
      _
    $region43: #{tpu_custom_call.1} parent=1 // pred_check_branch
      %85 = sbr.rel (0) target = $region45
    $region44: #{tpu_custom_call.1} parent=1 // pred_region
      %87 = dma.done [#allocation9], 1024
    $region45: #{tpu_custom_call.1} parent=1 // pred_fallthru
      _
    %v89 = vld [vmem:[#allocation2] sm:$0xff]
    %v90 = vpack.c.bf16 %v89, %v89
    %v91 = vld [vmem:[#allocation5] sm:$0xf]
    %v92 = vld [vmem:[#allocation5 + $0x4] sm:$0xf]
    %v93 = vld [vmem:[#allocation5 + $0x8] sm:$0xf]
    %v94 = vld [vmem:[#allocation5 + $0xc] sm:$0xf]
    %v95 = vld [vmem:[#allocation5 + $0x10] sm:$0xf]
    %v96 = vld [vmem:[#allocation5 + $0x14] sm:$0x1]
    %v97 = vld [vmem:[%s2] sm:$0x1]
    %v99 = vperm.slane %v97, 0
    %v107 = vunpack.c.l.b16 %v91
    %v108 = vunpack.c.l.b16 %v92
    %v109 = vunpack.c.l.b16 %v93
    %v110 = vunpack.c.l.b16 %v94
    %v111 = vunpack.c.l.b16 %v95
    %v112 = vunpack.c.l.b16 %v96
    %v113 = vpack.c.b16 %v108, %v107
    %v114 = vpack.c.b16 %v110, %v109
    %v115 = vpack.c.b16 %v112, %v111
    %vm118 = vcmask 343040
    %v120 = vsel %vm118, %v90, 0
    %vm122 = vcmask 1044480
    %v124 = vsel %vm122, %v115, 0
    %126 = vmatpush.bf16.msra.mxu0 0
    %127 = vmatpush.bf16.msra.mxu0 0
    %128 = vmatpush.bf16.msra.mxu0 0
    %129 = vmatpush.bf16.msra.mxu0 0
    %130 = vmatpush.bf16.msra.mxu0 0
    %131 = vmatpush.bf16.msra.mxu0 %v124
    %132 = vmatpush.bf16.msra.mxu0 %v114
    %133 = vmatpush.bf16.msra.mxu0 %v113
    %134 = vmatmul.bf16.gmra.mxu0 %v120
    %v135 = vpop.f32.mrf.mxu0
    %v136 = vadd.f32 %v99, %v135
    %v137 = vpop.f32.mrf.mxu0
    %138 = vdwg.mxu0
    %v139 = vmax.f32 %v136, 0.0
    %v140 = vpack.c.bf16 %v139, %v139
    %v141 = vld [vmem:[#allocation7] sm:$0xf]
    %v142 = vld [vmem:[#allocation7 + $0x4] sm:$0xf]
    %v143 = vld [vmem:[#allocation7 + $0x8] sm:$0xf]
    %v144 = vld [vmem:[#allocation7 + $0xc] sm:$0xf]
    %v145 = vld [vmem:[#allocation7 + $0x10] sm:$0xf]
    %v146 = vld [vmem:[#allocation7 + $0x14] sm:$0xf]
    %v147 = vld [vmem:[#allocation7 + $0x18] sm:$0xf]
    %v148 = vld [vmem:[#allocation7 + $0x1c] sm:$0xf]
    %v149 = vld [vmem:[#allocation7 + $0x20] sm:$0xf]
    %v150 = vld [vmem:[#allocation7 + $0x24] sm:$0xf]
    %v151 = vld [vmem:[#allocation7 + $0x28] sm:$0xf]
    %v152 = vld [vmem:[#allocation7 + $0x2c] sm:$0xf]
    %v153 = vld [vmem:[#allocation7 + $0x30] sm:$0xf]
    %v154 = vld [vmem:[#allocation7 + $0x34] sm:$0xf]
    %v155 = vld [vmem:[#allocation7 + $0x38] sm:$0xf]
    %v156 = vld [vmem:[#allocation7 + $0x3c] sm:$0xf]
    %v157 = vld [vmem:[%s4] sm:$0x1]
    %v159 = vperm.slane %v157, 0
    %v177 = vunpack.c.l.b16 %v141
    %v178 = vunpack.c.l.b16 %v142
    %v179 = vunpack.c.l.b16 %v143
    %v180 = vunpack.c.l.b16 %v144
    %v181 = vunpack.c.l.b16 %v145
    %v182 = vunpack.c.l.b16 %v146
    %v183 = vunpack.c.l.b16 %v147
    %v184 = vunpack.c.l.b16 %v148
    %v185 = vunpack.c.l.b16 %v149
    %v186 = vunpack.c.l.b16 %v150
    %v187 = vunpack.c.l.b16 %v151
    %v188 = vunpack.c.l.b16 %v152
    %v189 = vunpack.c.l.b16 %v153
    %v190 = vunpack.c.l.b16 %v154
    %v191 = vunpack.c.l.b16 %v155
    %v192 = vunpack.c.l.b16 %v156
    %v193 = vpack.c.b16 %v178, %v177
    %v194 = vpack.c.b16 %v180, %v179
    %v195 = vpack.c.b16 %v182, %v181
    %v196 = vpack.c.b16 %v184, %v183
    %v197 = vpack.c.b16 %v186, %v185
    %v198 = vpack.c.b16 %v188, %v187
    %v199 = vpack.c.b16 %v190, %v189
    %v200 = vpack.c.b16 %v192, %v191
    %209 = vmatpush.bf16.msra.mxu0 %v200
    %210 = vmatpush.bf16.msra.mxu0 %v199
    %211 = vmatpush.bf16.msra.mxu0 %v198
    %212 = vmatpush.bf16.msra.mxu0 %v197
    %213 = vmatpush.bf16.msra.mxu0 %v196
    %214 = vmatpush.bf16.msra.mxu0 %v195
    %215 = vmatpush.bf16.msra.mxu0 %v194
    %216 = vmatpush.bf16.msra.mxu0 %v193
    %217 = vmatmul.bf16.gmra.mxu0 %v140
    %v218 = vpop.f32.mrf.mxu0
    %v219 = vadd.f32 %v159, %v218
    %v220 = vpop.f32.mrf.mxu0
    %221 = vdwg.mxu0
    %v222 = vmax.f32 %v219, 0.0
    %v223 = vpack.c.bf16 %v222, %v222
    %v224 = vld [vmem:[#allocation8] sm:$0xf]
    %v225 = vld [vmem:[#allocation8 + $0x4] sm:$0xf]
    %v226 = vld [vmem:[#allocation8 + $0x8] sm:$0xf]
    %v227 = vld [vmem:[#allocation8 + $0xc] sm:$0xf]
    %v228 = vld [vmem:[#allocation8 + $0x10] sm:$0xf]
    %v229 = vld [vmem:[#allocation8 + $0x14] sm:$0xf]
    %v230 = vld [vmem:[#allocation8 + $0x18] sm:$0xf]
    %v231 = vld [vmem:[#allocation8 + $0x1c] sm:$0xf]
    %v232 = vld [vmem:[#allocation8 + $0x20] sm:$0xf]
    %v233 = vld [vmem:[#allocation8 + $0x24] sm:$0xf]
    %v234 = vld [vmem:[#allocation8 + $0x28] sm:$0xf]
    %v235 = vld [vmem:[#allocation8 + $0x2c] sm:$0xf]
    %v236 = vld [vmem:[#allocation8 + $0x30] sm:$0xf]
    %v237 = vld [vmem:[#allocation8 + $0x34] sm:$0xf]
    %v238 = vld [vmem:[#allocation8 + $0x38] sm:$0xf]
    %v239 = vld [vmem:[#allocation8 + $0x3c] sm:$0xf]
    %v240 = vld [vmem:[%s6] sm:$0x1]
    %v242 = vperm.slane %v240, 0
    %v260 = vunpack.c.l.b16 %v224
    %v261 = vunpack.c.l.b16 %v225
    %v262 = vunpack.c.l.b16 %v226
    %v263 = vunpack.c.l.b16 %v227
    %v264 = vunpack.c.l.b16 %v228
    %v265 = vunpack.c.l.b16 %v229
    %v266 = vunpack.c.l.b16 %v230
    %v267 = vunpack.c.l.b16 %v231
    %v268 = vunpack.c.l.b16 %v232
    %v269 = vunpack.c.l.b16 %v233
    %v270 = vunpack.c.l.b16 %v234
    %v271 = vunpack.c.l.b16 %v235
    %v272 = vunpack.c.l.b16 %v236
    %v273 = vunpack.c.l.b16 %v237
    %v274 = vunpack.c.l.b16 %v238
    %v275 = vunpack.c.l.b16 %v239
    %v276 = vpack.c.b16 %v261, %v260
    %v277 = vpack.c.b16 %v263, %v262
    %v278 = vpack.c.b16 %v265, %v264
    %v279 = vpack.c.b16 %v267, %v266
    %v280 = vpack.c.b16 %v269, %v268
    %v281 = vpack.c.b16 %v271, %v270
    %v282 = vpack.c.b16 %v273, %v272
    %v283 = vpack.c.b16 %v275, %v274
    %292 = vmatpush.bf16.msra.mxu0 %v283
    %293 = vmatpush.bf16.msra.mxu0 %v282
    %294 = vmatpush.bf16.msra.mxu0 %v281
    %295 = vmatpush.bf16.msra.mxu0 %v280
    %296 = vmatpush.bf16.msra.mxu0 %v279
    %297 = vmatpush.bf16.msra.mxu0 %v278
    %298 = vmatpush.bf16.msra.mxu0 %v277
    %299 = vmatpush.bf16.msra.mxu0 %v276
    %300 = vmatmul.bf16.gmra.mxu0 %v223
    %v301 = vpop.f32.mrf.mxu0
    %v302 = vadd.f32 %v242, %v301
    %v303 = vpop.f32.mrf.mxu0
    %304 = vdwg.mxu0
    %305 = vst [vmem:[#allocation10] sm:$0xff] %v302
    // Predicated region
    $region46: #{tpu_custom_call.1} parent=1 // pred_check
      _
    $region47: #{tpu_custom_call.1} parent=1 // pred_check_branch
      %307 = sbr.rel (0) target = $region49
    $region48: #{tpu_custom_call.1} parent=1 // pred_region
      %309 = vsyncadd [#allocation4], 0
      %s311 = sshll.u32 [#allocation10], 4
      %s312 = int_to_ptr.vmem [resolvable:$true] %s311
      %s313 = sshll.u32 %s7, 4
      %s314 = int_to_ptr.hbm [resolvable:$true] %s313
      %316 = dma.vmem_to_hbm [thread:$0]  %s312, 128, %s314, [#allocation4]
    $region49: #{tpu_custom_call.1} parent=1 // pred_fallthru
      _
    // Predicated region
    $region50: #{tpu_custom_call.1} parent=1 // pred_check
      _
    $region51: #{tpu_custom_call.1} parent=1 // pred_check_branch
      %318 = sbr.rel (0) target = $region53
    $region52: #{tpu_custom_call.1} parent=1 // pred_region
      %320 = dma.done [#allocation4], 128
    $region53: #{tpu_custom_call.1} parent=1 // pred_fallthru
      _
    %321 = vsyncpa [#allocation3], 1
    %322 = vsyncpa [#allocation6], 1
    %323 = vsyncpa [#allocation9], 1
    %324 = vsyncpa [#allocation4], 1

</llo_original>
